<compile_context>
chip_gen: v5e
topology: v5e:2x2
jax: 0.10.0
libtpu: 0.0.40
codegen_flags: <defaults>
</compile_context>

<pallas_src>
import math

import jax
import jax.numpy as jnp
from jax import lax
from jax.experimental import pallas as pl
from jax.experimental.pallas import tpu as pltpu

# ---- problem sizes (synthetic, consistent with the module's __init__) -------
B = 2              # batch
E = 4              # num_edge_type (bond types) in GraphConv
N = 16             # n_node
D = 8              # in_dim (node feature dim)
H = 16             # hidden_dim_dict['gnn'] = hidden_dim_dict['linear'] = [16]
MASKED_ROW = list(range(N // 2))
EPS = 1e-5         # BatchNorm1d eps

assert H == 2 * D  # keeps every packed weight 16 lanes wide

# Packed-parameter row layout: everything is 16 lanes wide and 8-row aligned, so
# all in-kernel parameter slices are sublane-tile selects (never lane shifts).
_R_SELF = 0        # [ 0:  8)  w_self                    (D, H)
_R_EDGE = 8        # [ 8: 40)  w_edge, edge-type major   (E*D, H)
_R_LIN1 = 40       # [40: 56)  w_lin1                    (H, H)
_R_LIN2 = 56       # [56: 72)  w_lin2                    (H, 2D)
_R_BIAS = 72       # [72: 80)  rows: b_self, b_e0..b_e3, b_lin1, b_lin2, pad
_R_NODE = 80       # [80: 96)  lanes 0:8 mask, 8..11 bn1_g, bn1_b, bn2_g, bn2_b
_R_TOT = 96


def _fold_over_batch(v):
    """(B*N, k) -> (N, k): sum the B per-batch row blocks (8-aligned slices)."""
    acc = v[0:N]
    for b in range(1, B):
        acc = acc + v[b * N:(b + 1) * N]
    return acc


def _tile_over_batch(v):
    """(N, k) -> (B*N, k): replicate per-node values for every batch block."""
    return jnp.concatenate([v] * B, axis=0)


def _bn_relu(h, gamma, beta):
    """BatchNorm1d(n_node): training-mode batch stats over (batch, feature) + ReLU.

    h: (B*N, C) rows grouped by batch; gamma/beta: (N, 1).  Single pass
    (sum + sum-of-squares), affine folded into y = h*scale + shift.
    TODO(synk): eval-mode running statistics are not modelled (train() forward).
    """
    c = h.shape[1]
    denom = 1.0 / float(B * c)
    rs = jnp.sum(h, axis=1, keepdims=True)            # (B*N, 1)
    rss = jnp.sum(h * h, axis=1, keepdims=True)       # (B*N, 1)
    mean = _fold_over_batch(rs) * denom                # (N, 1)
    ex2 = _fold_over_batch(rss) * denom                # (N, 1)
    var = ex2 - mean * mean                            # biased batch variance
    scale = gamma * lax.rsqrt(var + EPS)               # (N, 1)
    shift = beta - mean * scale                        # (N, 1)
    y = h * _tile_over_batch(scale) + _tile_over_batch(shift)
    return jnp.maximum(y, 0.0)


def coupling_kernel(adj_ref, x_ref, wp_ref, out_ref, logdet_ref):
    x = x_ref[...]                                     # (B*N, D)
    wp = wp_ref[...]                                   # (96, 16)

    node = wp[_R_NODE:_R_NODE + N]                     # (N, 16)
    mask = node[:, :D]                                 # (N, D)
    bn1_g = node[:, D:D + 1]
    bn1_b = node[:, D + 1:D + 2]
    bn2_g = node[:, D + 2:D + 3]
    bn2_b = node[:, D + 3:D + 4]
    bias = wp[_R_BIAS:_R_BIAS + 8]                     # (8, H)

    mask_t = _tile_over_batch(mask)                    # (B*N, D)
    mx = mask_t * x                                    # masked_x

    # ---- GraphConv ----------------------------------------------------------
    # self term
    h = jnp.dot(mx, wp[_R_SELF:_R_SELF + D],
                preferred_element_type=jnp.float32) + bias[0:1]        # (B*N, H)
    # per-edge-type projections (bias added BEFORE aggregation, as in the
    # reference).  Weights are sublane-stacked -> 8-aligned slices, no lane ops.
    m_blocks = []
    for e in range(E):
        w_e = wp[_R_EDGE + e * D:_R_EDGE + (e + 1) * D]                # (D, H)
        m_blocks.append(jnp.dot(mx, w_e, preferred_element_type=jnp.float32)
                        + bias[1 + e:2 + e])
    m_all = jnp.concatenate(m_blocks, axis=0)                          # (E*B*N, H)
    # single fused aggregation: batch-block-diagonal adjacency, K = E*B*N = 128
    h = h + jnp.dot(adj_ref[...], m_all, preferred_element_type=jnp.float32)

    # ---- norm[0]+relu, net_lin[0]+norm_lin[0]+relu, net_lin[-1] --------------
    h = _bn_relu(h, bn1_g, bn1_b)
    h = _bn_relu(jnp.dot(h, wp[_R_LIN1:_R_LIN1 + H],
                         preferred_element_type=jnp.float32) + bias[5:6],
                 bn2_g, bn2_b)
    st = jnp.dot(h, wp[_R_LIN2:_R_LIN2 + H],
                 preferred_element_type=jnp.float32) + bias[6:7]       # (B*N, 2D)

    # ---- affine coupling + logdet --------------------------------------------
    log_s = st[:, :D]
    t = st[:, D:]
    # One exp per element drives both the scale and its log, so logdet matches
    # the applied transform exactly:  log sigmoid(z) = min(z,0) - log(1+e^{-|z|})
    p = jnp.exp(-jnp.abs(log_s))
    logsig = jnp.minimum(log_s, 0.0) - jnp.log(1.0 + p)
    s = jnp.exp(logsig)                                                # sigmoid
    out_ref[...] = mx + (1.0 - mask_t) * (x + t) * s                   # one store

    # logdet: the reference sums log|s| over ALL rows (masked rows included).
    b_idx = lax.broadcasted_iota(jnp.int32, (B, B * N), 0)
    r_idx = lax.broadcasted_iota(jnp.int32, (B, B * N), 1)
    sel = ((r_idx >= b_idx * N) & (r_idx < (b_idx + 1) * N)).astype(jnp.float32)
    per_b = jnp.dot(sel, logsig, preferred_element_type=jnp.float32)   # (B, D)
    logdet_ref[...] = jnp.sum(per_b, axis=1, keepdims=True)            # (B, 1)


def init_params(key):
    """Deterministic synthetic parameters matching the module's shapes."""
    ks = jax.random.split(key, 8)

    def uni(k, shape, fan_in):
        bound = 1.0 / math.sqrt(fan_in)
        return jax.random.uniform(k, shape, jnp.float32, -bound, bound)

    mask = jnp.ones((N, D), jnp.float32)
    mask = mask.at[jnp.array(MASKED_ROW)].set(0.0)

    params = {
        "mask": mask,
        # GraphConv(in_dim -> H): self linear + per-edge-type linear
        "w_self": uni(ks[0], (D, H), D),
        "b_self": uni(ks[1], (1, H), D),
        "w_edge": uni(ks[2], (E, D, H), D),
        "b_edge": uni(ks[3], (E, 1, H), D),
        "bn1_g": jnp.ones((N, 1), jnp.float32),
        "bn1_b": jnp.zeros((N, 1), jnp.float32),
        # net_lin[0]: GraphLinear(H -> H) + BN
        "w_lin1": uni(ks[4], (H, H), H),
        "b_lin1": uni(ks[5], (1, H), H),
        "bn2_g": jnp.ones((N, 1), jnp.float32),
        "bn2_b": jnp.zeros((N, 1), jnp.float32),
        # net_lin[-1]: GraphLinear(H -> 2*in_dim)
        "w_lin2": uni(ks[6], (H, 2 * D), H),
        "b_lin2": uni(ks[7], (1, 2 * D), H),
    }
    # TODO(synk): self.scale = nn.Parameter(torch.zeros(1)) is unused in
    # forward(); omitted here.
    return params


def pack_params(params):
    """One-time packing of all constants into a single (96, 16) array (1 DMA)."""
    w_edge = params["w_edge"].reshape(E * D, H)
    b_edge = params["b_edge"].reshape(E, H)
    bias_rows = jnp.concatenate(
        [params["b_self"], b_edge, params["b_lin1"], params["b_lin2"],
         jnp.zeros((1, H), jnp.float32)], axis=0)                      # (8, H)
    node_rows = jnp.concatenate(
        [params["mask"], params["bn1_g"], params["bn1_b"],
         params["bn2_g"], params["bn2_b"],
         jnp.zeros((N, 4), jnp.float32)], axis=1)                      # (N, 16)
    wp = jnp.concatenate(
        [params["w_self"], w_edge, params["w_lin1"], params["w_lin2"],
         bias_rows, node_rows], axis=0)                                # (96, 16)
    assert wp.shape == (_R_TOT, H)
    return wp


@jax.jit
def graph_affine_coupling_forward(adj, x, wp):
    # Per-call layout plumbing only: adjacency laid out block-diagonally over the
    # batch with columns ordered (edge_type, batch, node) so the kernel's
    # aggregation is one (B*N, E*B*N) @ (E*B*N, H) matmul.  In production this
    # would be adj's upstream storage format.
    adj_bd = jnp.einsum('bc,bemn->bmecn', jnp.eye(B, dtype=adj.dtype),
                        adj).reshape(B * N, E * B * N)                 # (32, 128)
    x2 = x.reshape(B * N, D)

    vmem = pl.BlockSpec(memory_space=pltpu.MemorySpace.VMEM)
    out2, logdet = pl.pallas_call(
        coupling_kernel,
        out_shape=(jax.ShapeDtypeStruct((B * N, D), jnp.float32),
                   jax.ShapeDtypeStruct((B, 1), jnp.float32)),
        in_specs=[vmem] * 3,
        out_specs=(vmem, vmem),
        cost_estimate=pl.CostEstimate(flops=230_000, transcendentals=1_600,
                                      bytes_accessed=26_000),
    )(adj_bd, x2, wp)
    return out2.reshape(B, N, D), logdet[:, 0]


# ---- pure-JAX reference (for a loose numerical self-check) -------------------
def _bn_relu_ref(h, gamma, beta):
    mean = jnp.mean(h, axis=(0, 2), keepdims=True)
    var = jnp.mean((h - mean) ** 2, axis=(0, 2), keepdims=True)
    y = (h - mean) * lax.rsqrt(var + EPS) * gamma[None] + beta[None]
    return jnp.maximum(y, 0.0)


def reference_forward(adj, x, params):
    hp = lax.Precision.HIGHEST
    mask = params["mask"]
    mx = mask[None] * x
    h = jnp.einsum('bnd,dh->bnh', mx, params["w_self"], precision=hp) \
        + params["b_self"]
    for e in range(E):
        m_e = jnp.einsum('bnd,dh->bnh', mx, params["w_edge"][e], precision=hp) \
            + params["b_edge"][e]
        h = h + jnp.einsum('bmn,bnh->bmh', adj[:, e], m_e, precision=hp)
    h = _bn_relu_ref(h, params["bn1_g"], params["bn1_b"])
    h = _bn_relu_ref(
        jnp.einsum('bnh,hk->bnk', h, params["w_lin1"], precision=hp)
        + params["b_lin1"], params["bn2_g"], params["bn2_b"])
    st = jnp.einsum('bnh,hk->bnk', h, params["w_lin2"], precision=hp) \
        + params["b_lin2"]
    log_s, t = st[..., :D], st[..., D:]
    s = jax.nn.sigmoid(log_s)
    out = mx + (1.0 - mask[None]) * (x + t) * s
    logdet = jnp.sum(jnp.log(jnp.abs(s)).reshape(x.shape[0], -1), axis=1)
    return out, logdet


if __name__ == "__main__":
    key = jax.random.PRNGKey(0)
    k_adj, k_x, k_p = jax.random.split(key, 3)
    adj = jax.random.uniform(k_adj, (B, E, N, N), jnp.float32)
    x = jax.random.normal(k_x, (B, N, D), jnp.float32)
    params = init_params(k_p)
    wp = pack_params(params)          # hoisted: packed once, not per call

    out, logdet = graph_affine_coupling_forward(adj, x, wp)
    jax.block_until_ready((out, logdet))
    assert out.shape == (B, N, D) and logdet.shape == (B,)

    # loose tolerance: accounts for MXU f32 pass-splitting inside the kernel
    out_r, logdet_r = reference_forward(adj, x, params)
    assert jnp.allclose(out, out_r, rtol=2e-2, atol=2e-2), \
        float(jnp.max(jnp.abs(out - out_r)))
    assert jnp.allclose(logdet, logdet_r, rtol=2e-2, atol=2e-2), \
        (float(logdet[0]), float(logdet_r[0]))
    print("KERNEL_OK")
</pallas_src>

<mosaic_0001>
module attributes {stable_mosaic.version = 11 : i64} {
  func.func @coupling_kernel(%arg0: memref<32x128xf32, #tpu.memory_space<vmem>>, %arg1: memref<32x8xf32, #tpu.memory_space<vmem>>, %arg2: memref<96x16xf32, #tpu.memory_space<vmem>>, %arg3: memref<32x8xf32, #tpu.memory_space<vmem>>, %arg4: memref<2x1xf32, #tpu.memory_space<vmem>>) attributes {dimension_semantics = [], scalar_prefetch = 0 : i64, scratch_operands = 0 : i64, tpu.core_type = #tpu.core_type<tc>} {
    %c0 = arith.constant 0 : index
    %c0_0 = arith.constant 0 : index
    %0 = vector.load %arg1[%c0, %c0_0] : memref<32x8xf32, #tpu.memory_space<vmem>>, vector<32x8xf32>
    %c0_1 = arith.constant 0 : index
    %c0_2 = arith.constant 0 : index
    %1 = vector.load %arg2[%c0_1, %c0_2] : memref<96x16xf32, #tpu.memory_space<vmem>>, vector<96x16xf32>
    %2 = vector.extract_strided_slice %1 {offsets = [80, 0], sizes = [16, 16], strides = [1, 1]} : vector<96x16xf32> to vector<16x16xf32>
    %3 = vector.extract_strided_slice %2 {offsets = [0, 0], sizes = [16, 8], strides = [1, 1]} : vector<16x16xf32> to vector<16x8xf32>
    %4 = vector.extract_strided_slice %2 {offsets = [0, 8], sizes = [16, 1], strides = [1, 1]} : vector<16x16xf32> to vector<16x1xf32>
    %5 = vector.extract_strided_slice %2 {offsets = [0, 9], sizes = [16, 1], strides = [1, 1]} : vector<16x16xf32> to vector<16x1xf32>
    %6 = vector.extract_strided_slice %2 {offsets = [0, 10], sizes = [16, 1], strides = [1, 1]} : vector<16x16xf32> to vector<16x1xf32>
    %7 = vector.extract_strided_slice %2 {offsets = [0, 11], sizes = [16, 1], strides = [1, 1]} : vector<16x16xf32> to vector<16x1xf32>
    %8 = vector.extract_strided_slice %1 {offsets = [72, 0], sizes = [8, 16], strides = [1, 1]} : vector<96x16xf32> to vector<8x16xf32>
    %9 = tpu.concatenate %3, %3 in 0 : vector<16x8xf32>, vector<16x8xf32> -> vector<32x8xf32>
    %10 = arith.mulf %9, %0 : vector<32x8xf32>
    %11 = vector.extract_strided_slice %1 {offsets = [0, 0], sizes = [8, 16], strides = [1, 1]} : vector<96x16xf32> to vector<8x16xf32>
    %cst = arith.constant dense<0.000000e+00> : vector<32x16xf32>
    %12 = tpu.matmul %10, %11, %cst {dimension_numbers = #tpu.dot_dimension_numbers<[1], [0], [0], [1], [0, 0, 1, 1], [], []>} : vector<32x8xf32>, vector<8x16xf32>, vector<32x16xf32> -> vector<32x16xf32>
    %13 = vector.extract_strided_slice %8 {offsets = [0, 0], sizes = [1, 16], strides = [1, 1]} : vector<8x16xf32> to vector<1x16xf32>
    %14 = vector.broadcast %13 : vector<1x16xf32> to vector<32x16xf32>
    %15 = arith.addf %12, %14 : vector<32x16xf32>
    %16 = vector.extract_strided_slice %1 {offsets = [8, 0], sizes = [8, 16], strides = [1, 1]} : vector<96x16xf32> to vector<8x16xf32>
    %cst_3 = arith.constant dense<0.000000e+00> : vector<32x16xf32>
    %17 = tpu.matmul %10, %16, %cst_3 {dimension_numbers = #tpu.dot_dimension_numbers<[1], [0], [0], [1], [0, 0, 1, 1], [], []>} : vector<32x8xf32>, vector<8x16xf32>, vector<32x16xf32> -> vector<32x16xf32>
    %18 = vector.extract_strided_slice %8 {offsets = [1, 0], sizes = [1, 16], strides = [1, 1]} : vector<8x16xf32> to vector<1x16xf32>
    %19 = vector.broadcast %18 : vector<1x16xf32> to vector<32x16xf32>
    %20 = arith.addf %17, %19 : vector<32x16xf32>
    %21 = vector.extract_strided_slice %1 {offsets = [16, 0], sizes = [8, 16], strides = [1, 1]} : vector<96x16xf32> to vector<8x16xf32>
    %cst_4 = arith.constant dense<0.000000e+00> : vector<32x16xf32>
    %22 = tpu.matmul %10, %21, %cst_4 {dimension_numbers = #tpu.dot_dimension_numbers<[1], [0], [0], [1], [0, 0, 1, 1], [], []>} : vector<32x8xf32>, vector<8x16xf32>, vector<32x16xf32> -> vector<32x16xf32>
    %23 = vector.extract_strided_slice %8 {offsets = [2, 0], sizes = [1, 16], strides = [1, 1]} : vector<8x16xf32> to vector<1x16xf32>
    %24 = vector.broadcast %23 : vector<1x16xf32> to vector<32x16xf32>
    %25 = arith.addf %22, %24 : vector<32x16xf32>
    %26 = vector.extract_strided_slice %1 {offsets = [24, 0], sizes = [8, 16], strides = [1, 1]} : vector<96x16xf32> to vector<8x16xf32>
    %cst_5 = arith.constant dense<0.000000e+00> : vector<32x16xf32>
    %27 = tpu.matmul %10, %26, %cst_5 {dimension_numbers = #tpu.dot_dimension_numbers<[1], [0], [0], [1], [0, 0, 1, 1], [], []>} : vector<32x8xf32>, vector<8x16xf32>, vector<32x16xf32> -> vector<32x16xf32>
    %28 = vector.extract_strided_slice %8 {offsets = [3, 0], sizes = [1, 16], strides = [1, 1]} : vector<8x16xf32> to vector<1x16xf32>
    %29 = vector.broadcast %28 : vector<1x16xf32> to vector<32x16xf32>
    %30 = arith.addf %27, %29 : vector<32x16xf32>
    %31 = vector.extract_strided_slice %1 {offsets = [32, 0], sizes = [8, 16], strides = [1, 1]} : vector<96x16xf32> to vector<8x16xf32>
    %cst_6 = arith.constant dense<0.000000e+00> : vector<32x16xf32>
    %32 = tpu.matmul %10, %31, %cst_6 {dimension_numbers = #tpu.dot_dimension_numbers<[1], [0], [0], [1], [0, 0, 1, 1], [], []>} : vector<32x8xf32>, vector<8x16xf32>, vector<32x16xf32> -> vector<32x16xf32>
    %33 = vector.extract_strided_slice %8 {offsets = [4, 0], sizes = [1, 16], strides = [1, 1]} : vector<8x16xf32> to vector<1x16xf32>
    %34 = vector.broadcast %33 : vector<1x16xf32> to vector<32x16xf32>
    %35 = arith.addf %32, %34 : vector<32x16xf32>
    %36 = tpu.concatenate %20, %25, %30, %35 in 0 : vector<32x16xf32>, vector<32x16xf32>, vector<32x16xf32>, vector<32x16xf32> -> vector<128x16xf32>
    %c0_7 = arith.constant 0 : index
    %c0_8 = arith.constant 0 : index
    %37 = vector.load %arg0[%c0_7, %c0_8] : memref<32x128xf32, #tpu.memory_space<vmem>>, vector<32x128xf32>
    %cst_9 = arith.constant dense<0.000000e+00> : vector<32x16xf32>
    %38 = tpu.matmul %37, %36, %cst_9 {dimension_numbers = #tpu.dot_dimension_numbers<[1], [0], [0], [1], [0, 0, 1, 1], [], []>} : vector<32x128xf32>, vector<128x16xf32>, vector<32x16xf32> -> vector<32x16xf32>
    %39 = arith.addf %15, %38 : vector<32x16xf32>
    %cst_10 = arith.constant dense<0.000000e+00> : vector<32xf32>
    %40 = vector.multi_reduction <add>, %39, %cst_10 [1] : vector<32x16xf32> to vector<32xf32>
    %41 = vector.shape_cast %40 : vector<32xf32> to vector<32x1xf32>
    %42 = arith.mulf %39, %39 : vector<32x16xf32>
    %cst_11 = arith.constant dense<0.000000e+00> : vector<32xf32>
    %43 = vector.multi_reduction <add>, %42, %cst_11 [1] : vector<32x16xf32> to vector<32xf32>
    %44 = vector.shape_cast %43 : vector<32xf32> to vector<32x1xf32>
    %45 = vector.extract_strided_slice %41 {offsets = [0, 0], sizes = [16, 1], strides = [1, 1]} : vector<32x1xf32> to vector<16x1xf32>
    %46 = vector.extract_strided_slice %41 {offsets = [16, 0], sizes = [16, 1], strides = [1, 1]} : vector<32x1xf32> to vector<16x1xf32>
    %47 = arith.addf %45, %46 : vector<16x1xf32>
    %cst_12 = arith.constant 3.125000e-02 : f32
    %48 = vector.broadcast %cst_12 : f32 to vector<16x1xf32>
    %49 = arith.mulf %47, %48 : vector<16x1xf32>
    %50 = vector.extract_strided_slice %44 {offsets = [0, 0], sizes = [16, 1], strides = [1, 1]} : vector<32x1xf32> to vector<16x1xf32>
    %51 = vector.extract_strided_slice %44 {offsets = [16, 0], sizes = [16, 1], strides = [1, 1]} : vector<32x1xf32> to vector<16x1xf32>
    %52 = arith.addf %50, %51 : vector<16x1xf32>
    %cst_13 = arith.constant 3.125000e-02 : f32
    %53 = vector.broadcast %cst_13 : f32 to vector<16x1xf32>
    %54 = arith.mulf %52, %53 : vector<16x1xf32>
    %55 = arith.mulf %49, %49 : vector<16x1xf32>
    %56 = arith.subf %54, %55 : vector<16x1xf32>
    %cst_14 = arith.constant 9.99999974E-6 : f32
    %57 = vector.broadcast %cst_14 : f32 to vector<16x1xf32>
    %58 = arith.addf %56, %57 : vector<16x1xf32>
    %59 = math.rsqrt %58 : vector<16x1xf32>
    %60 = arith.mulf %4, %59 : vector<16x1xf32>
    %61 = arith.mulf %49, %60 : vector<16x1xf32>
    %62 = arith.subf %5, %61 : vector<16x1xf32>
    %63 = tpu.concatenate %60, %60 in 0 : vector<16x1xf32>, vector<16x1xf32> -> vector<32x1xf32>
    %64 = vector.broadcast %63 : vector<32x1xf32> to vector<32x16xf32>
    %65 = arith.mulf %39, %64 : vector<32x16xf32>
    %66 = tpu.concatenate %62, %62 in 0 : vector<16x1xf32>, vector<16x1xf32> -> vector<32x1xf32>
    %67 = vector.broadcast %66 : vector<32x1xf32> to vector<32x16xf32>
    %68 = arith.addf %65, %67 : vector<32x16xf32>
    %cst_15 = arith.constant 0.000000e+00 : f32
    %69 = vector.broadcast %cst_15 : f32 to vector<32x16xf32>
    %70 = arith.maximumf %68, %69 : vector<32x16xf32>
    %71 = vector.extract_strided_slice %1 {offsets = [40, 0], sizes = [16, 16], strides = [1, 1]} : vector<96x16xf32> to vector<16x16xf32>
    %cst_16 = arith.constant dense<0.000000e+00> : vector<32x16xf32>
    %72 = tpu.matmul %70, %71, %cst_16 {dimension_numbers = #tpu.dot_dimension_numbers<[1], [0], [0], [1], [0, 0, 1, 1], [], []>} : vector<32x16xf32>, vector<16x16xf32>, vector<32x16xf32> -> vector<32x16xf32>
    %73 = vector.extract_strided_slice %8 {offsets = [5, 0], sizes = [1, 16], strides = [1, 1]} : vector<8x16xf32> to vector<1x16xf32>
    %74 = vector.broadcast %73 : vector<1x16xf32> to vector<32x16xf32>
    %75 = arith.addf %72, %74 : vector<32x16xf32>
    %cst_17 = arith.constant dense<0.000000e+00> : vector<32xf32>
    %76 = vector.multi_reduction <add>, %75, %cst_17 [1] : vector<32x16xf32> to vector<32xf32>
    %77 = vector.shape_cast %76 : vector<32xf32> to vector<32x1xf32>
    %78 = arith.mulf %75, %75 : vector<32x16xf32>
    %cst_18 = arith.constant dense<0.000000e+00> : vector<32xf32>
    %79 = vector.multi_reduction <add>, %78, %cst_18 [1] : vector<32x16xf32> to vector<32xf32>
    %80 = vector.shape_cast %79 : vector<32xf32> to vector<32x1xf32>
    %81 = vector.extract_strided_slice %77 {offsets = [0, 0], sizes = [16, 1], strides = [1, 1]} : vector<32x1xf32> to vector<16x1xf32>
    %82 = vector.extract_strided_slice %77 {offsets = [16, 0], sizes = [16, 1], strides = [1, 1]} : vector<32x1xf32> to vector<16x1xf32>
    %83 = arith.addf %81, %82 : vector<16x1xf32>
    %cst_19 = arith.constant 3.125000e-02 : f32
    %84 = vector.broadcast %cst_19 : f32 to vector<16x1xf32>
    %85 = arith.mulf %83, %84 : vector<16x1xf32>
    %86 = vector.extract_strided_slice %80 {offsets = [0, 0], sizes = [16, 1], strides = [1, 1]} : vector<32x1xf32> to vector<16x1xf32>
    %87 = vector.extract_strided_slice %80 {offsets = [16, 0], sizes = [16, 1], strides = [1, 1]} : vector<32x1xf32> to vector<16x1xf32>
    %88 = arith.addf %86, %87 : vector<16x1xf32>
    %cst_20 = arith.constant 3.125000e-02 : f32
    %89 = vector.broadcast %cst_20 : f32 to vector<16x1xf32>
    %90 = arith.mulf %88, %89 : vector<16x1xf32>
    %91 = arith.mulf %85, %85 : vector<16x1xf32>
    %92 = arith.subf %90, %91 : vector<16x1xf32>
    %cst_21 = arith.constant 9.99999974E-6 : f32
    %93 = vector.broadcast %cst_21 : f32 to vector<16x1xf32>
    %94 = arith.addf %92, %93 : vector<16x1xf32>
    %95 = math.rsqrt %94 : vector<16x1xf32>
    %96 = arith.mulf %6, %95 : vector<16x1xf32>
    %97 = arith.mulf %85, %96 : vector<16x1xf32>
    %98 = arith.subf %7, %97 : vector<16x1xf32>
    %99 = tpu.concatenate %96, %96 in 0 : vector<16x1xf32>, vector<16x1xf32> -> vector<32x1xf32>
    %100 = vector.broadcast %99 : vector<32x1xf32> to vector<32x16xf32>
    %101 = arith.mulf %75, %100 : vector<32x16xf32>
    %102 = tpu.concatenate %98, %98 in 0 : vector<16x1xf32>, vector<16x1xf32> -> vector<32x1xf32>
    %103 = vector.broadcast %102 : vector<32x1xf32> to vector<32x16xf32>
    %104 = arith.addf %101, %103 : vector<32x16xf32>
    %cst_22 = arith.constant 0.000000e+00 : f32
    %105 = vector.broadcast %cst_22 : f32 to vector<32x16xf32>
    %106 = arith.maximumf %104, %105 : vector<32x16xf32>
    %107 = vector.extract_strided_slice %1 {offsets = [56, 0], sizes = [16, 16], strides = [1, 1]} : vector<96x16xf32> to vector<16x16xf32>
    %cst_23 = arith.constant dense<0.000000e+00> : vector<32x16xf32>
    %108 = tpu.matmul %106, %107, %cst_23 {dimension_numbers = #tpu.dot_dimension_numbers<[1], [0], [0], [1], [0, 0, 1, 1], [], []>} : vector<32x16xf32>, vector<16x16xf32>, vector<32x16xf32> -> vector<32x16xf32>
    %109 = vector.extract_strided_slice %8 {offsets = [6, 0], sizes = [1, 16], strides = [1, 1]} : vector<8x16xf32> to vector<1x16xf32>
    %110 = vector.broadcast %109 : vector<1x16xf32> to vector<32x16xf32>
    %111 = arith.addf %108, %110 : vector<32x16xf32>
    %112 = vector.extract_strided_slice %111 {offsets = [0, 0], sizes = [32, 8], strides = [1, 1]} : vector<32x16xf32> to vector<32x8xf32>
    %113 = vector.extract_strided_slice %111 {offsets = [0, 8], sizes = [32, 8], strides = [1, 1]} : vector<32x16xf32> to vector<32x8xf32>
    %114 = math.absf %112 : vector<32x8xf32>
    %cst_24 = arith.constant 0.000000e+00 : f32
    %115 = vector.broadcast %cst_24 : f32 to vector<32x8xf32>
    %116 = arith.subf %115, %114 : vector<32x8xf32>
    %117 = math.exp %116 : vector<32x8xf32>
    %cst_25 = arith.constant 0.000000e+00 : f32
    %118 = vector.broadcast %cst_25 : f32 to vector<32x8xf32>
    %119 = arith.minimumf %112, %118 : vector<32x8xf32>
    %cst_26 = arith.constant 1.000000e+00 : f32
    %120 = vector.broadcast %cst_26 : f32 to vector<32x8xf32>
    %121 = arith.addf %120, %117 : vector<32x8xf32>
    %122 = math.log %121 : vector<32x8xf32>
    %123 = arith.subf %119, %122 : vector<32x8xf32>
    %124 = math.exp %123 : vector<32x8xf32>
    %cst_27 = arith.constant 1.000000e+00 : f32
    %125 = vector.broadcast %cst_27 : f32 to vector<32x8xf32>
    %126 = arith.subf %125, %9 : vector<32x8xf32>
    %127 = arith.addf %0, %113 : vector<32x8xf32>
    %128 = arith.mulf %126, %127 : vector<32x8xf32>
    %129 = arith.mulf %128, %124 : vector<32x8xf32>
    %130 = arith.addf %10, %129 : vector<32x8xf32>
    %c0_28 = arith.constant 0 : index
    %c0_29 = arith.constant 0 : index
    %131 = vector.load %arg3[%c0_28, %c0_29] : memref<32x8xf32, #tpu.memory_space<vmem>>, vector<32x8xf32>
    tpu.vector_store %arg3[%c0_28, %c0_29], %130 {strides = array<i32>} : memref<32x8xf32, #tpu.memory_space<vmem>>, vector<32x8xf32>,
    %132 = tpu.iota {dimensions = array<i32: 0>} : vector<2x32xi32>
    %133 = tpu.iota {dimensions = array<i32: 1>} : vector<2x32xi32>
    %c16_i32 = arith.constant 16 : i32
    %134 = vector.broadcast %c16_i32 : i32 to vector<2x32xi32>
    %135 = arith.muli %132, %134 : vector<2x32xi32>
    %136 = arith.cmpi sge, %133, %135 : vector<2x32xi32>
    %c1_i32 = arith.constant 1 : i32
    %137 = vector.broadcast %c1_i32 : i32 to vector<2x32xi32>
    %138 = arith.addi %132, %137 : vector<2x32xi32>
    %c16_i32_30 = arith.constant 16 : i32
    %139 = vector.broadcast %c16_i32_30 : i32 to vector<2x32xi32>
    %140 = arith.muli %138, %139 : vector<2x32xi32>
    %141 = arith.cmpi slt, %133, %140 : vector<2x32xi32>
    %142 = arith.andi %136, %141 : vector<2x32xi1>
    %143 = arith.extui %142 : vector<2x32xi1> to vector<2x32xi32>
    %144 = arith.sitofp %143 : vector<2x32xi32> to vector<2x32xf32>
    %cst_31 = arith.constant dense<0.000000e+00> : vector<2x8xf32>
    %145 = tpu.matmul %144, %123, %cst_31 {dimension_numbers = #tpu.dot_dimension_numbers<[1], [0], [0], [1], [0, 0, 1, 1], [], []>} : vector<2x32xf32>, vector<32x8xf32>, vector<2x8xf32> -> vector<2x8xf32>
    %cst_32 = arith.constant dense<0.000000e+00> : vector<2xf32>
    %146 = vector.multi_reduction <add>, %145, %cst_32 [1] : vector<2x8xf32> to vector<2xf32>
    %147 = vector.shape_cast %146 : vector<2xf32> to vector<2x1xf32>
    %c0_33 = arith.constant 0 : index
    %c0_34 = arith.constant 0 : index
    %148 = vector.load %arg4[%c0_33, %c0_34] : memref<2x1xf32, #tpu.memory_space<vmem>>, vector<2x1xf32>
    tpu.vector_store %arg4[%c0_33, %c0_34], %147 {strides = array<i32>} : memref<2x1xf32, #tpu.memory_space<vmem>>, vector<2x1xf32>,
    return
  }
}

</mosaic_0001>

<llo_original>
// kernel: graph_affine_coupling_forward.1
$region0: #{graph_affine_coupling_forward.1}
  #allocation0 [shape = 'u32[]', space=smem, size = 0x4, offset = 0x4, fixed_abs, tag = 'smem constant byte address 0x4 - core index']
  #allocation1 [shape = 'u32[72,128]{1,0:T(1,128)}', space=vmem, size = 0x9000, scoped, tag = 'internal scratch']
  %s0 = inlined_call_operand.vmem [shape: f32[32,128], index: 0, kind: input, shape index: {}]
  %s1 = inlined_call_operand.vmem [shape: f32[32,8], index: 1, kind: input, shape index: {}]
  %s2 = inlined_call_operand.vmem [shape: f32[96,16], index: 2, kind: input, shape index: {}]
  %s3 = inlined_call_operand.vmem [shape: f32[32,8], index: 3, kind: output, shape index: {0}]
  %s4 = inlined_call_operand.vmem [shape: f32[2,1], index: 4, kind: output, shape index: {1}]
  %5 = xla_tuple %s3, %s4
  %s6 = sld [smem:[#allocation0]]
  $region30: #{graph_affine_coupling_forward.1} parent=0
    _
  %s8 = ssub.s32 1, %s6
  %s9 = scalar_select 0, %s8, %s6
  // Predicated region
  $region2: #{graph_affine_coupling_forward.1} parent=0 // pred_check
    _
  $region3: #{graph_affine_coupling_forward.1} parent=0 // pred_check_branch
    %11 = sbr.rel (0) target = $region5
  $region4: #{graph_affine_coupling_forward.1} parent=0 // pred_region
    _
  $region5: #{graph_affine_coupling_forward.1} parent=0 // pred_fallthru
    _
  // Predicated region
  $region6: #{graph_affine_coupling_forward.1} parent=0 // pred_check
    _
  $region7: #{graph_affine_coupling_forward.1} parent=0 // pred_check_branch
    %13 = sbr.rel (0) target = $region9
  $region8: #{graph_affine_coupling_forward.1} parent=0 // pred_region
    _
  $region9: #{graph_affine_coupling_forward.1} parent=0 // pred_fallthru
    _
  // Predicated region
  $region10: #{graph_affine_coupling_forward.1} parent=0 // pred_check
    _
  $region11: #{graph_affine_coupling_forward.1} parent=0 // pred_check_branch
    %15 = sbr.rel (0) target = $region13
  $region12: #{graph_affine_coupling_forward.1} parent=0 // pred_region
    _
  $region13: #{graph_affine_coupling_forward.1} parent=0 // pred_fallthru
    _
  %v16 = vld [vmem:[%s1] sm:$0xff]
  %v17 = vld [vmem:[%s1 + $0x8] sm:$0xff]
  %v18 = vld [vmem:[%s1 + $0x10] sm:$0xff]
  %v19 = vld [vmem:[%s1 + $0x18] sm:$0xff]
  %v20 = vld [vmem:[%s2] sm:$0xff]
  %v21 = vld [vmem:[%s2 + $0x8] sm:$0xff]
  %v22 = vld [vmem:[%s2 + $0x10] sm:$0xff]
  %v23 = vld [vmem:[%s2 + $0x18] sm:$0xff]
  %v24 = vld [vmem:[%s2 + $0x20] sm:$0xff]
  %v25 = vld [vmem:[%s2 + $0x28] sm:$0xff]
  %v26 = vld [vmem:[%s2 + $0x30] sm:$0xff]
  %v27 = vld [vmem:[%s2 + $0x38] sm:$0xff]
  %v28 = vld [vmem:[%s2 + $0x40] sm:$0xff]
  %v29 = vld [vmem:[%s2 + $0x48] sm:$0xff]
  %v30 = vld [vmem:[%s2 + $0x50] sm:$0xff]
  %v31 = vld [vmem:[%s2 + $0x58] sm:$0xff]
  %v32 = vmul.f32 %v30, %v16
  %v33 = vmul.f32 %v31, %v17
  %v34 = vmul.f32 %v30, %v18
  %v35 = vmul.f32 %v31, %v19
  %v36 = vperm.slane %v29, 0
  %vm37 = vcmask 64512
  %v39 = vsel %vm37, %v32, 0
  %v42 = vsel %vm37, %v33, 0
  %v45 = vsel %vm37, %v34, 0
  %v48 = vsel %vm37, %v35, 0
  %50 = vmatpush.msra.mxu0 0.0
  %51 = vmatpush.msra.mxu0 0.0
  %52 = vmatpush.msra.mxu0 0.0
  %53 = vmatpush.msra.mxu0 0.0
  %54 = vmatpush.msra.mxu0 0.0
  %55 = vmatpush.msra.mxu0 0.0
  %56 = vmatpush.msra.mxu0 0.0
  %57 = vmatpush.msra.mxu0 0.0
  %58 = vmatpush.msra.mxu0 0.0
  %59 = vmatpush.msra.mxu0 0.0
  %60 = vmatpush.msra.mxu0 0.0
  %61 = vmatpush.msra.mxu0 0.0
  %62 = vmatpush.msra.mxu0 0.0
  %63 = vmatpush.msra.mxu0 0.0
  %64 = vmatpush.msra.mxu0 0.0
  %65 = vmatpush.msra.mxu0 %v20
  %66 = vmatmul.f32.gmra.mxu0 %v39
  %v67 = vpop.f32.mrf.mxu0
  %v68 = vadd.f32 %v36, %v67
  %69 = vmatmul.f32.gmra.mxu0 %v42
  %v70 = vpop.f32.mrf.mxu0
  %v71 = vadd.f32 %v36, %v70
  %72 = vmatmul.f32.gmra.mxu0 %v45
  %v73 = vpop.f32.mrf.mxu0
  %v74 = vadd.f32 %v36, %v73
  %75 = vmatmul.f32.gmra.mxu0 %v48
  %v76 = vpop.f32.mrf.mxu0
  %v77 = vadd.f32 %v36, %v76
  %78 = vdwg.mxu0
  %v79 = vperm.slane %v29, 1
  %80 = vmatpush.msra.mxu0 0.0
  %81 = vmatpush.msra.mxu0 0.0
  %82 = vmatpush.msra.mxu0 0.0
  %83 = vmatpush.msra.mxu0 0.0
  %84 = vmatpush.msra.mxu0 0.0
  %85 = vmatpush.msra.mxu0 0.0
  %86 = vmatpush.msra.mxu0 0.0
  %87 = vmatpush.msra.mxu0 0.0
  %88 = vmatpush.msra.mxu0 0.0
  %89 = vmatpush.msra.mxu0 0.0
  %90 = vmatpush.msra.mxu0 0.0
  %91 = vmatpush.msra.mxu0 0.0
  %92 = vmatpush.msra.mxu0 0.0
  %93 = vmatpush.msra.mxu0 0.0
  %94 = vmatpush.msra.mxu0 0.0
  %95 = vmatpush.msra.mxu0 %v21
  %96 = vmatmul.f32.gmra.mxu0 %v39
  %v97 = vpop.f32.mrf.mxu0
  %v98 = vadd.f32 %v79, %v97
  %99 = vmatmul.f32.gmra.mxu0 %v42
  %v100 = vpop.f32.mrf.mxu0
  %v101 = vadd.f32 %v79, %v100
  %102 = vmatmul.f32.gmra.mxu0 %v45
  %v103 = vpop.f32.mrf.mxu0
  %v104 = vadd.f32 %v79, %v103
  %105 = vmatmul.f32.gmra.mxu0 %v48
  %v106 = vpop.f32.mrf.mxu0
  %v107 = vadd.f32 %v79, %v106
  %108 = vdwg.mxu0
  %v109 = vperm.slane %v29, 2
  %110 = vmatpush.msra.mxu0 0.0
  %111 = vmatpush.msra.mxu0 0.0
  %112 = vmatpush.msra.mxu0 0.0
  %113 = vmatpush.msra.mxu0 0.0
  %114 = vmatpush.msra.mxu0 0.0
  %115 = vmatpush.msra.mxu0 0.0
  %116 = vmatpush.msra.mxu0 0.0
  %117 = vmatpush.msra.mxu0 0.0
  %118 = vmatpush.msra.mxu0 0.0
  %119 = vmatpush.msra.mxu0 0.0
  %120 = vmatpush.msra.mxu0 0.0
  %121 = vmatpush.msra.mxu0 0.0
  %122 = vmatpush.msra.mxu0 0.0
  %123 = vmatpush.msra.mxu0 0.0
  %124 = vmatpush.msra.mxu0 0.0
  %125 = vmatpush.msra.mxu0 %v22
  %126 = vmatmul.f32.gmra.mxu0 %v39
  %v127 = vpop.f32.mrf.mxu0
  %v128 = vadd.f32 %v109, %v127
  %129 = vmatmul.f32.gmra.mxu0 %v42
  %v130 = vpop.f32.mrf.mxu0
  %v131 = vadd.f32 %v109, %v130
  %132 = vmatmul.f32.gmra.mxu0 %v45
  %v133 = vpop.f32.mrf.mxu0
  %v134 = vadd.f32 %v109, %v133
  %135 = vmatmul.f32.gmra.mxu0 %v48
  %v136 = vpop.f32.mrf.mxu0
  %v137 = vadd.f32 %v109, %v136
  %138 = vdwg.mxu0
  %v139 = vperm.slane %v29, 3
  %140 = vmatpush.msra.mxu0 0.0
  %141 = vmatpush.msra.mxu0 0.0
  %142 = vmatpush.msra.mxu0 0.0
  %143 = vmatpush.msra.mxu0 0.0
  %144 = vmatpush.msra.mxu0 0.0
  %145 = vmatpush.msra.mxu0 0.0
  %146 = vmatpush.msra.mxu0 0.0
  %147 = vmatpush.msra.mxu0 0.0
  %148 = vmatpush.msra.mxu0 0.0
  %149 = vmatpush.msra.mxu0 0.0
  %150 = vmatpush.msra.mxu0 0.0
  %151 = vmatpush.msra.mxu0 0.0
  %152 = vmatpush.msra.mxu0 0.0
  %153 = vmatpush.msra.mxu0 0.0
  %154 = vmatpush.msra.mxu0 0.0
  %155 = vmatpush.msra.mxu0 %v23
  %156 = vmatmul.f32.gmra.mxu0 %v39
  %v157 = vpop.f32.mrf.mxu0
  %v158 = vadd.f32 %v139, %v157
  %159 = vmatmul.f32.gmra.mxu0 %v42
  %v160 = vpop.f32.mrf.mxu0
  %v161 = vadd.f32 %v139, %v160
  %162 = vmatmul.f32.gmra.mxu0 %v45
  %v163 = vpop.f32.mrf.mxu0
  %v164 = vadd.f32 %v139, %v163
  %165 = vmatmul.f32.gmra.mxu0 %v48
  %v166 = vpop.f32.mrf.mxu0
  %v167 = vadd.f32 %v139, %v166
  %168 = vdwg.mxu0
  %v169 = vperm.slane %v29, 4
  %170 = vmatpush.msra.mxu0 0.0
  %171 = vmatpush.msra.mxu0 0.0
  %172 = vmatpush.msra.mxu0 0.0
  %173 = vmatpush.msra.mxu0 0.0
  %174 = vmatpush.msra.mxu0 0.0
  %175 = vmatpush.msra.mxu0 0.0
  %176 = vmatpush.msra.mxu0 0.0
  %177 = vmatpush.msra.mxu0 0.0
  %178 = vmatpush.msra.mxu0 0.0
  %179 = vmatpush.msra.mxu0 0.0
  %180 = vmatpush.msra.mxu0 0.0
  %181 = vmatpush.msra.mxu0 0.0
  %182 = vmatpush.msra.mxu0 0.0
  %183 = vmatpush.msra.mxu0 0.0
  %184 = vmatpush.msra.mxu0 0.0
  %185 = vmatpush.msra.mxu0 %v24
  %186 = vmatmul.f32.gmra.mxu0 %v39
  %v187 = vpop.f32.mrf.mxu0
  %v188 = vadd.f32 %v169, %v187
  %189 = vmatmul.f32.gmra.mxu0 %v42
  %v190 = vpop.f32.mrf.mxu0
  %v191 = vadd.f32 %v169, %v190
  %192 = vmatmul.f32.gmra.mxu0 %v45
  %v193 = vpop.f32.mrf.mxu0
  %v194 = vadd.f32 %v169, %v193
  %195 = vmatmul.f32.gmra.mxu0 %v48
  %v196 = vpop.f32.mrf.mxu0
  %v197 = vadd.f32 %v169, %v196
  %198 = vdwg.mxu0
  %v199 = vld [vmem:[%s0] sm:$0xff]
  %v200 = vld [vmem:[%s0 + $0x8] sm:$0xff]
  %v201 = vld [vmem:[%s0 + $0x10] sm:$0xff]
  %v202 = vld [vmem:[%s0 + $0x18] sm:$0xff]
  %203 = vmatpush.msra.mxu0 %v197
  %204 = vmatpush.msra.mxu0 %v194
  %205 = vmatpush.msra.mxu0 %v191
  %206 = vmatpush.msra.mxu0 %v188
  %207 = vmatpush.msra.mxu0 %v167
  %208 = vmatpush.msra.mxu0 %v164
  %209 = vmatpush.msra.mxu0 %v161
  %210 = vmatpush.msra.mxu0 %v158
  %211 = vmatpush.msra.mxu0 %v137
  %212 = vmatpush.msra.mxu0 %v134
  %213 = vmatpush.msra.mxu0 %v131
  %214 = vmatpush.msra.mxu0 %v128
  %215 = vmatpush.msra.mxu0 %v107
  %216 = vmatpush.msra.mxu0 %v104
  %217 = vmatpush.msra.mxu0 %v101
  %218 = vmatpush.msra.mxu0 %v98
  %219 = vmatmul.f32.gmra.mxu0 %v199
  %v220 = vpop.f32.mrf.mxu0
  %v221 = vadd.f32 0.0, %v220
  %222 = vmatmul.f32.gmra.mxu0 %v200
  %v223 = vpop.f32.mrf.mxu0
  %v224 = vadd.f32 0.0, %v223
  %225 = vmatmul.f32.gmra.mxu0 %v201
  %v226 = vpop.f32.mrf.mxu0
  %v227 = vadd.f32 0.0, %v226
  %228 = vmatmul.f32.gmra.mxu0 %v202
  %v229 = vpop.f32.mrf.mxu0
  %v230 = vadd.f32 0.0, %v229
  %231 = vdwg.mxu0
  %v232 = vadd.f32 %v68, %v221
  %v233 = vadd.f32 %v71, %v224
  %v234 = vadd.f32 %v74, %v227
  %v235 = vadd.f32 %v77, %v230
  %vm236 = vcmask 130048
  %v237 = vsel %vm236, %v232, 0.0
  %238 = vadd.xlane.f32.xlu0 %v237
  %v239 = vpop.xlane.xlu0 %238
  %v240 = vsel %vm236, %v233, 0.0
  %241 = vadd.xlane.f32.xlu0 %v240
  %v242 = vpop.xlane.xlu0 %241
  %v243 = vsel %vm236, %v234, 0.0
  %244 = vadd.xlane.f32.xlu0 %v243
  %v245 = vpop.xlane.xlu0 %244
  %v246 = vsel %vm236, %v235, 0.0
  %247 = vadd.xlane.f32.xlu0 %v246
  %v248 = vpop.xlane.xlu0 %247
  %v249 = vmul.f32 %v232, %v232
  %v250 = vmul.f32 %v233, %v233
  %v251 = vmul.f32 %v234, %v234
  %v252 = vmul.f32 %v235, %v235
  %v253 = vsel %vm236, %v249, 0.0
  %254 = vadd.xlane.f32.xlu0 %v253
  %v255 = vpop.xlane.xlu0 %254
  %v256 = vsel %vm236, %v250, 0.0
  %257 = vadd.xlane.f32.xlu0 %v256
  %v258 = vpop.xlane.xlu0 %257
  %v259 = vsel %vm236, %v251, 0.0
  %260 = vadd.xlane.f32.xlu0 %v259
  %v261 = vpop.xlane.xlu0 %260
  %v262 = vsel %vm236, %v252, 0.0
  %263 = vadd.xlane.f32.xlu0 %v262
  %v264 = vpop.xlane.xlu0 %263
  %v265 = vadd.f32 %v239, %v245
  %v266 = vadd.f32 %v242, %v248
  %v267 = vmul.f32 %v265, 0.03125
  %v268 = vmul.f32 %v266, 0.03125
  %v269 = vadd.f32 %v255, %v261
  %v270 = vadd.f32 %v258, %v264
  %v271 = vmul.f32 %v269, 0.03125
  %v272 = vmul.f32 %v270, 0.03125
  %v273 = vmul.f32 %v267, %v267
  %v274 = vmul.f32 %v268, %v268
  %v275 = vsub.f32 %v271, %v273
  %v276 = vsub.f32 %v272, %v274
  %v277 = vadd.f32 %v275, 1e-05
  %v278 = vadd.f32 %v276, 1e-05
  %v279 = vrsqrt.pop %v277
  %v280 = vmul.f32 %v279, %v277
  %v281 = vmul.f32 %v280, %v279
  %v282 = vmul.f32 0.5, %v281
  %v283 = vsub.f32 1.5, %v282
  %v284 = vmul.f32 %v279, %v283
  %vm285 = vweird.f32 %v277
  %vm286 = vweird.f32 %v279
  %vm287 = vmor %vm285, %vm286
  %v288 = vsel %vm287, %v279, %v284
  %v289 = vrsqrt.pop %v278
  %v290 = vmul.f32 %v289, %v278
  %v291 = vmul.f32 %v290, %v289
  %v292 = vmul.f32 0.5, %v291
  %v293 = vsub.f32 1.5, %v292
  %v294 = vmul.f32 %v289, %v293
  %vm295 = vweird.f32 %v278
  %vm296 = vweird.f32 %v289
  %vm297 = vmor %vm295, %vm296
  %v298 = vsel %vm297, %v289, %v294
  %v299 = vmul.f32 %v30, %v288
  %v300 = vmul.f32 %v31, %v298
  %v301 = vmul.f32 %v267, %v299
  %v302 = vmul.f32 %v268, %v300
  %305 = vrot.lane.b32.xlu0 %v301, 1
  %v306 = vpop.permute.xlu0 %305
  %307 = vrot.lane.b32.xlu0 %v302, 1
  %v308 = vpop.permute.xlu0 %307
  %v311 = vsub.f32 %v30, %v306
  %v312 = vsub.f32 %v31, %v308
  %314 = vset.pattern.permute.xlu0 8
  %315 = vperm.xlu0 %314, %v299
  %v316 = vpop.permute.xlu0 %315
  %319 = vset.pattern.permute.xlu0 8
  %320 = vperm.xlu0 %319, %v300
  %v321 = vpop.permute.xlu0 %320
  %v323 = vmul.f32 %v232, %v316
  %v324 = vmul.f32 %v233, %v321
  %v325 = vmul.f32 %v234, %v316
  %v326 = vmul.f32 %v235, %v321
  %328 = vset.pattern.permute.xlu0 9
  %329 = vperm.xlu0 %328, %v311
  %v330 = vpop.permute.xlu0 %329
  %333 = vset.pattern.permute.xlu0 9
  %334 = vperm.xlu0 %333, %v312
  %v335 = vpop.permute.xlu0 %334
  %v337 = vadd.f32 %v323, %v330
  %v338 = vadd.f32 %v324, %v335
  %v339 = vadd.f32 %v325, %v330
  %v340 = vadd.f32 %v326, %v335
  %v341 = vmax.f32 %v337, 0.0
  %v342 = vmax.f32 %v338, 0.0
  %v343 = vmax.f32 %v339, 0.0
  %v344 = vmax.f32 %v340, 0.0
  %v345 = vperm.slane %v29, 5
  %v347 = vsel %vm236, %v341, 0
  %v350 = vsel %vm236, %v342, 0
  %v353 = vsel %vm236, %v343, 0
  %v356 = vsel %vm236, %v344, 0
  %358 = vmatpush.msra.mxu0 0.0
  %359 = vmatpush.msra.mxu0 0.0
  %360 = vmatpush.msra.mxu0 0.0
  %361 = vmatpush.msra.mxu0 0.0
  %362 = vmatpush.msra.mxu0 0.0
  %363 = vmatpush.msra.mxu0 0.0
  %364 = vmatpush.msra.mxu0 0.0
  %365 = vmatpush.msra.mxu0 0.0
  %366 = vmatpush.msra.mxu0 0.0
  %367 = vmatpush.msra.mxu0 0.0
  %368 = vmatpush.msra.mxu0 0.0
  %369 = vmatpush.msra.mxu0 0.0
  %370 = vmatpush.msra.mxu0 0.0
  %371 = vmatpush.msra.mxu0 0.0
  %372 = vmatpush.msra.mxu0 %v26
  %373 = vmatpush.msra.mxu0 %v25
  %374 = vmatmul.f32.gmra.mxu0 %v347
  %v375 = vpop.f32.mrf.mxu0
  %v376 = vadd.f32 %v345, %v375
  %377 = vmatmul.f32.gmra.mxu0 %v350
  %v378 = vpop.f32.mrf.mxu0
  %v379 = vadd.f32 %v345, %v378
  %380 = vmatmul.f32.gmra.mxu0 %v353
  %v381 = vpop.f32.mrf.mxu0
  %v382 = vadd.f32 %v345, %v381
  %383 = vmatmul.f32.gmra.mxu0 %v356
  %v384 = vpop.f32.mrf.mxu0
  %v385 = vadd.f32 %v345, %v384
  %386 = vdwg.mxu0
  %v387 = vsel %vm236, %v376, 0.0
  %388 = vadd.xlane.f32.xlu0 %v387
  %v389 = vpop.xlane.xlu0 %388
  %v390 = vsel %vm236, %v379, 0.0
  %391 = vadd.xlane.f32.xlu0 %v390
  %v392 = vpop.xlane.xlu0 %391
  %v393 = vsel %vm236, %v382, 0.0
  %394 = vadd.xlane.f32.xlu0 %v393
  %v395 = vpop.xlane.xlu0 %394
  %v396 = vsel %vm236, %v385, 0.0
  %397 = vadd.xlane.f32.xlu0 %v396
  %v398 = vpop.xlane.xlu0 %397
  %v399 = vmul.f32 %v376, %v376
  %v400 = vmul.f32 %v379, %v379
  %v401 = vmul.f32 %v382, %v382
  %v402 = vmul.f32 %v385, %v385
  %v403 = vsel %vm236, %v399, 0.0
  %404 = vadd.xlane.f32.xlu0 %v403
  %v405 = vpop.xlane.xlu0 %404
  %v406 = vsel %vm236, %v400, 0.0
  %407 = vadd.xlane.f32.xlu0 %v406
  %v408 = vpop.xlane.xlu0 %407
  %v409 = vsel %vm236, %v401, 0.0
  %410 = vadd.xlane.f32.xlu0 %v409
  %v411 = vpop.xlane.xlu0 %410
  %v412 = vsel %vm236, %v402, 0.0
  %413 = vadd.xlane.f32.xlu0 %v412
  %v414 = vpop.xlane.xlu0 %413
  %v415 = vadd.f32 %v389, %v395
  %v416 = vadd.f32 %v392, %v398
  %v417 = vmul.f32 %v415, 0.03125
  %v418 = vmul.f32 %v416, 0.03125
  %v419 = vadd.f32 %v405, %v411
  %v420 = vadd.f32 %v408, %v414
  %v421 = vmul.f32 %v419, 0.03125
  %v422 = vmul.f32 %v420, 0.03125
  %v423 = vmul.f32 %v417, %v417
  %v424 = vmul.f32 %v418, %v418
  %v425 = vsub.f32 %v421, %v423
  %v426 = vsub.f32 %v422, %v424
  %v427 = vadd.f32 %v425, 1e-05
  %v428 = vadd.f32 %v426, 1e-05
  %v429 = vrsqrt.pop %v427
  %v430 = vmul.f32 %v429, %v427
  %v431 = vmul.f32 %v430, %v429
  %v432 = vmul.f32 0.5, %v431
  %v433 = vsub.f32 1.5, %v432
  %v434 = vmul.f32 %v429, %v433
  %vm435 = vweird.f32 %v427
  %vm436 = vweird.f32 %v429
  %vm437 = vmor %vm435, %vm436
  %v438 = vsel %vm437, %v429, %v434
  %v439 = vrsqrt.pop %v428
  %v440 = vmul.f32 %v439, %v428
  %v441 = vmul.f32 %v440, %v439
  %v442 = vmul.f32 0.5, %v441
  %v443 = vsub.f32 1.5, %v442
  %v444 = vmul.f32 %v439, %v443
  %vm445 = vweird.f32 %v428
  %vm446 = vweird.f32 %v439
  %vm447 = vmor %vm445, %vm446
  %v448 = vsel %vm447, %v439, %v444
  %v449 = vmul.f32 %v30, %v438
  %v450 = vmul.f32 %v31, %v448
  %v451 = vmul.f32 %v417, %v449
  %v452 = vmul.f32 %v418, %v450
  %455 = vrot.lane.b32.xlu0 %v451, 1
  %v456 = vpop.permute.xlu0 %455
  %457 = vrot.lane.b32.xlu0 %v452, 1
  %v458 = vpop.permute.xlu0 %457
  %v461 = vsub.f32 %v30, %v456
  %v462 = vsub.f32 %v31, %v458
  %464 = vset.pattern.permute.xlu0 10
  %465 = vperm.xlu0 %464, %v449
  %v466 = vpop.permute.xlu0 %465
  %469 = vset.pattern.permute.xlu0 10
  %470 = vperm.xlu0 %469, %v450
  %v471 = vpop.permute.xlu0 %470
  %v473 = vmul.f32 %v376, %v466
  %v474 = vmul.f32 %v379, %v471
  %v475 = vmul.f32 %v382, %v466
  %v476 = vmul.f32 %v385, %v471
  %478 = vset.pattern.permute.xlu0 11
  %479 = vperm.xlu0 %478, %v461
  %v480 = vpop.permute.xlu0 %479
  %483 = vset.pattern.permute.xlu0 11
  %484 = vperm.xlu0 %483, %v462
  %v485 = vpop.permute.xlu0 %484
  %v487 = vadd.f32 %v473, %v480
  %v488 = vadd.f32 %v474, %v485
  %v489 = vadd.f32 %v475, %v480
  %v490 = vadd.f32 %v476, %v485
  %v491 = vmax.f32 %v487, 0.0
  %v492 = vmax.f32 %v488, 0.0
  %v493 = vmax.f32 %v489, 0.0
  %v494 = vmax.f32 %v490, 0.0
  %v495 = vperm.slane %v29, 6
  %v497 = vsel %vm236, %v491, 0
  %v500 = vsel %vm236, %v492, 0
  %v503 = vsel %vm236, %v493, 0
  %v506 = vsel %vm236, %v494, 0
  %508 = vmatpush.msra.mxu0 0.0
  %509 = vmatpush.msra.mxu0 0.0
  %510 = vmatpush.msra.mxu0 0.0
  %511 = vmatpush.msra.mxu0 0.0
  %512 = vmatpush.msra.mxu0 0.0
  %513 = vmatpush.msra.mxu0 0.0
  %514 = vmatpush.msra.mxu0 0.0
  %515 = vmatpush.msra.mxu0 0.0
  %516 = vmatpush.msra.mxu0 0.0
  %517 = vmatpush.msra.mxu0 0.0
  %518 = vmatpush.msra.mxu0 0.0
  %519 = vmatpush.msra.mxu0 0.0
  %520 = vmatpush.msra.mxu0 0.0
  %521 = vmatpush.msra.mxu0 0.0
  %522 = vmatpush.msra.mxu0 %v28
  %523 = vmatpush.msra.mxu0 %v27
  %524 = vmatmul.f32.gmra.mxu0 %v497
  %v525 = vpop.f32.mrf.mxu0
  %v526 = vadd.f32 %v495, %v525
  %527 = vmatmul.f32.gmra.mxu0 %v500
  %v528 = vpop.f32.mrf.mxu0
  %v529 = vadd.f32 %v495, %v528
  %530 = vmatmul.f32.gmra.mxu0 %v503
  %v531 = vpop.f32.mrf.mxu0
  %v532 = vadd.f32 %v495, %v531
  %533 = vmatmul.f32.gmra.mxu0 %v506
  %v534 = vpop.f32.mrf.mxu0
  %v535 = vadd.f32 %v495, %v534
  %536 = vdwg.mxu0
  %v537 = vand.u32 2147483647, %v526
  %v538 = vand.u32 2147483647, %v529
  %v539 = vand.u32 2147483647, %v532
  %v540 = vand.u32 2147483647, %v535
  %v541 = vsub.f32 0.0, %v537
  %v542 = vsub.f32 0.0, %v538
  %v543 = vsub.f32 0.0, %v539
  %v544 = vsub.f32 0.0, %v540
  %v545 = vmul.f32 %v541, 1.442695
  %v546 = vpow.pop %v545
  %v547 = vmul.f32 %v542, 1.442695
  %v548 = vpow.pop %v547
  %v549 = vmul.f32 %v543, 1.442695
  %v550 = vpow.pop %v549
  %v551 = vmul.f32 %v544, 1.442695
  %v552 = vpow.pop %v551
  %v553 = vmin.f32 %v526, 0.0
  %v554 = vmin.f32 %v529, 0.0
  %v555 = vmin.f32 %v532, 0.0
  %v556 = vmin.f32 %v535, 0.0
  %v557 = vadd.f32 %v546, 1.0
  %v558 = vadd.f32 %v548, 1.0
  %v559 = vadd.f32 %v550, 1.0
  %v560 = vadd.f32 %v552, 1.0
  %v561 = vlog2.pop %v557
  %v562 = vmul.f32 %v561, 0.6931472
  %v563 = vlog2.pop %v558
  %v564 = vmul.f32 %v563, 0.6931472
  %v565 = vlog2.pop %v559
  %v566 = vmul.f32 %v565, 0.6931472
  %v567 = vlog2.pop %v560
  %v568 = vmul.f32 %v567, 0.6931472
  %v569 = vsub.f32 %v553, %v562
  %v570 = vsub.f32 %v554, %v564
  %v571 = vsub.f32 %v555, %v566
  %v572 = vsub.f32 %v556, %v568
  %v573 = vmul.f32 %v569, 1.442695
  %v574 = vpow.pop %v573
  %v575 = vmul.f32 %v570, 1.442695
  %v576 = vpow.pop %v575
  %v577 = vmul.f32 %v571, 1.442695
  %v578 = vpow.pop %v577
  %v579 = vmul.f32 %v572, 1.442695
  %v580 = vpow.pop %v579
  %v581 = vsub.f32 1.0, %v30
  %v582 = vsub.f32 1.0, %v31
  %587 = vrot.lane.b32.xlu0 %v526, 120
  %v588 = vpop.permute.xlu0 %587
  %589 = vrot.lane.b32.xlu0 %v529, 120
  %v590 = vpop.permute.xlu0 %589
  %591 = vrot.lane.b32.xlu0 %v532, 120
  %v592 = vpop.permute.xlu0 %591
  %593 = vrot.lane.b32.xlu0 %v535, 120
  %v594 = vpop.permute.xlu0 %593
  %v599 = vadd.f32 %v16, %v588
  %v600 = vadd.f32 %v17, %v590
  %v601 = vadd.f32 %v18, %v592
  %v602 = vadd.f32 %v19, %v594
  %v603 = vmul.f32 %v581, %v599
  %v604 = vmul.f32 %v582, %v600
  %v605 = vmul.f32 %v581, %v601
  %v606 = vmul.f32 %v582, %v602
  %v607 = vmul.f32 %v603, %v574
  %v608 = vmul.f32 %v604, %v576
  %v609 = vmul.f32 %v605, %v578
  %v610 = vmul.f32 %v606, %v580
  %v611 = vadd.f32 %v32, %v607
  %v612 = vadd.f32 %v33, %v608
  %v613 = vadd.f32 %v34, %v609
  %v614 = vadd.f32 %v35, %v610
  %615 = vst.msk [vmem:[%s3] sm:$0xff] %vm37, %v611
  %616 = vst.msk [vmem:[%s3 + $0x8] sm:$0xff] %vm37, %v612
  %617 = vst.msk [vmem:[%s3 + $0x10] sm:$0xff] %vm37, %v613
  %618 = vst.msk [vmem:[%s3 + $0x18] sm:$0xff] %vm37, %v614
  %v619 = vlaneseq
  %v620 = vshrl.u32 %v619, 7
  %v621 = vlaneseq
  %v622 = vand.u32 %v621, 127
  %v623 = vmul.u32 %v620, 16
  %vm624 = vcmp.ge.s32.totalorder %v622, %v623
  %v625 = vadd.s32 %v620, 1
  %v626 = vmul.u32 %v625, 16
  %vm627 = vcmp.lt.s32.totalorder %v622, %v626
  %vm628 = vmand %vm624, %vm627
  %v629 = vsel %vm628, 1, 0
  %v630 = vcvt.s32.f32 %v629
  %vm631 = vcmask 261120
  %v633 = vsel %vm631, %v630, 0
  %635 = vmatpush.msra.mxu0 0.0
  %636 = vmatpush.msra.mxu0 0.0
  %637 = vmatpush.msra.mxu0 0.0
  %638 = vmatpush.msra.mxu0 0.0
  %639 = vmatpush.msra.mxu0 0.0
  %640 = vmatpush.msra.mxu0 0.0
  %641 = vmatpush.msra.mxu0 0.0
  %642 = vmatpush.msra.mxu0 0.0
  %643 = vmatpush.msra.mxu0 0.0
  %644 = vmatpush.msra.mxu0 0.0
  %645 = vmatpush.msra.mxu0 0.0
  %646 = vmatpush.msra.mxu0 0.0
  %647 = vmatpush.msra.mxu0 %v572
  %648 = vmatpush.msra.mxu0 %v571
  %649 = vmatpush.msra.mxu0 %v570
  %650 = vmatpush.msra.mxu0 %v569
  %651 = vmatmul.f32.gmra.mxu0 %v633
  %v652 = vpop.f32.mrf.mxu0
  %v653 = vadd.f32 0.0, %v652
  %654 = vdwg.mxu0
  %vm655 = vcmask 58368
  %v656 = vsel %vm655, %v653, 0.0
  %657 = vadd.xlane.f32.xlu0 %v656
  %v658 = vpop.xlane.xlu0 %657
  %vm659 = vcmask 1024
  %660 = vst.msk [vmem:[%s4] sm:$0x3] %vm659, %v658
  // Predicated region
  $region14: #{graph_affine_coupling_forward.1} parent=0 // pred_check
    _
  $region15: #{graph_affine_coupling_forward.1} parent=0 // pred_check_branch
    %662 = sbr.rel (0) target = $region17
  $region16: #{graph_affine_coupling_forward.1} parent=0 // pred_region
    _
  $region17: #{graph_affine_coupling_forward.1} parent=0 // pred_fallthru
    _
  // Predicated region
  $region18: #{graph_affine_coupling_forward.1} parent=0 // pred_check
    _
  $region19: #{graph_affine_coupling_forward.1} parent=0 // pred_check_branch
    %664 = sbr.rel (0) target = $region21
  $region20: #{graph_affine_coupling_forward.1} parent=0 // pred_region
    _
  $region21: #{graph_affine_coupling_forward.1} parent=0 // pred_fallthru
    _
  // Predicated region
  $region22: #{graph_affine_coupling_forward.1} parent=0 // pred_check
    _
  $region23: #{graph_affine_coupling_forward.1} parent=0 // pred_check_branch
    %666 = sbr.rel (0) target = $region25
  $region24: #{graph_affine_coupling_forward.1} parent=0 // pred_region
    _
  $region25: #{graph_affine_coupling_forward.1} parent=0 // pred_fallthru
    _
  // Predicated region
  $region26: #{graph_affine_coupling_forward.1} parent=0 // pred_check
    _
  $region27: #{graph_affine_coupling_forward.1} parent=0 // pred_check_branch
    %668 = sbr.rel (0) target = $region29
  $region28: #{graph_affine_coupling_forward.1} parent=0 // pred_region
    _
  $region29: #{graph_affine_coupling_forward.1} parent=0 // pred_fallthru
    _

</llo_original>
